<compile_context>
chip_gen: v5e
topology: v5e:2x2
jax: 0.10.0
libtpu: 0.0.40
codegen_flags: <defaults>
</compile_context>

<pallas_src>
import jax
import jax.numpy as jnp
from jax.experimental import pallas as pl
from jax.experimental.pallas import tpu as pltpu

FILTER_SIZES = (2, 3, 4)
LANE = 128


def _round_up(x, m):
    return (x + m - 1) // m * m


def mcnn_kernel(emb_ref, wall_ref, ball_ref, mask_ref, fcw_ref, fcb_ref, out_ref):
    # emb_ref : [TB, S + W_MAX - 1, E]  batch tile, seq zero-padded (matmul dtype)
    # wall_ref: [W_MAX * E, C_pad]      combined conv weights, zero padded
    # ball_ref: [1, C_pad]              combined conv bias (f32)
    # mask_ref: [S, C_pad]              1.0 where the conv position is valid
    # fcw_ref : [C_pad, O_pad]          fc weight, zero padded
    # fcb_ref : [1, O_pad]              fc bias (f32)
    # out_ref : [TB, O_pad]             f32, lane dense
    x = emb_ref[...]
    tb = x.shape[0]
    e = x.shape[2]
    s = mask_ref.shape[0]
    k = wall_ref.shape[0]
    w_max = k // e

    # im2col: row t holds x[t], x[t+1], ..., x[t+W_MAX-1] side by side.
    cols = [x[:, off:off + s, :] for off in range(w_max)]
    xcol = jnp.concatenate(cols, axis=-1).reshape(tb * s, k)        # [TB*S, K]

    # All three convolutions in a single MXU matmul (K = W_MAX * E).
    conv = jnp.dot(xcol, wall_ref[...], preferred_element_type=jnp.float32)
    conv = jnp.maximum(conv + ball_ref[...], 0.0)                   # bias + ReLU
    # Zero out positions past each filter's valid length (safe: ReLU >= 0).
    conv = conv.reshape(tb, s, -1) * mask_ref[...][None, :, :]
    pooled = jnp.max(conv, axis=1)                                  # [TB, C_pad]

    # Single fc matmul on the lane-dense pooled block.  (Dropout == identity.)
    out = jnp.dot(pooled.astype(fcw_ref.dtype), fcw_ref[...],
                  preferred_element_type=jnp.float32) + fcb_ref[...]
    out_ref[...] = out.astype(out_ref.dtype)


def mcnn_forward(text, emb_table, conv_params, fc_w, fc_b, *,
                 block_b=8, matmul_dtype=jnp.bfloat16):
    """text: [S, B] int tokens (same convention as the PyTorch module)."""
    tokens = text.T                                       # [B, S]
    embedded = emb_table[tokens].astype(matmul_dtype)     # [B, S, E]  (glue: gather)
    B, S, E = embedded.shape
    F = conv_params[0][0].shape[-1]
    O = fc_w.shape[1]
    w_max = max(w.shape[0] for (w, _) in conv_params)
    assert S >= w_max, "sequence must be at least as long as the largest filter"

    n_groups = len(conv_params)
    K = w_max * E
    C = n_groups * F
    C_pad = _round_up(C, LANE)
    O_pad = _round_up(O, LANE)

    # Combined conv weight / bias / validity mask (zero padded, lane dense).
    w_all = jnp.zeros((K, C_pad), jnp.float32)
    b_all = jnp.zeros((1, C_pad), jnp.float32)
    mask = jnp.zeros((S, C_pad), jnp.float32)
    for g, (w, b) in enumerate(conv_params):
        fs = w.shape[0]
        w_all = w_all.at[:fs * E, g * F:(g + 1) * F].set(w.reshape(fs * E, F))
        b_all = b_all.at[0, g * F:(g + 1) * F].set(b)
        valid = (jnp.arange(S) < (S - fs + 1)).astype(jnp.float32)
        mask = mask.at[:, g * F:(g + 1) * F].set(
            jnp.broadcast_to(valid[:, None], (S, F)))

    fcw_pad = jnp.zeros((C_pad, O_pad), jnp.float32).at[:C, :O].set(fc_w)
    fcb_pad = jnp.zeros((1, O_pad), jnp.float32).at[0, :O].set(fc_b)

    # Batch tile; pad batch to a multiple of the tile, pad seq so every shift
    # in the im2col is a plain static slice (no in-kernel padding).
    TB = block_b
    B_pad = _round_up(B, TB)
    S_in = S + w_max - 1
    emb_in = jnp.zeros((B_pad, S_in, E), matmul_dtype)
    emb_in = emb_in.at[:B, :S, :].set(embedded)

    w_all = w_all.astype(matmul_dtype)
    fcw_pad = fcw_pad.astype(matmul_dtype)

    grid = (B_pad // TB,)
    out = pl.pallas_call(
        mcnn_kernel,
        out_shape=jax.ShapeDtypeStruct((B_pad, O_pad), jnp.float32),
        grid=grid,
        in_specs=[
            pl.BlockSpec((TB, S_in, E), lambda b: (b, 0, 0)),
            # Grid-invariant operands: constant index_map -> fetched once.
            pl.BlockSpec((K, C_pad), lambda b: (0, 0)),
            pl.BlockSpec((1, C_pad), lambda b: (0, 0)),
            pl.BlockSpec((S, C_pad), lambda b: (0, 0)),
            pl.BlockSpec((C_pad, O_pad), lambda b: (0, 0)),
            pl.BlockSpec((1, O_pad), lambda b: (0, 0)),
        ],
        out_specs=pl.BlockSpec((TB, O_pad), lambda b: (b, 0)),
        compiler_params=pltpu.CompilerParams(
            dimension_semantics=("parallel",)),
    )(emb_in, w_all, b_all, mask, fcw_pad, fcb_pad)
    return out[:B, :O]


def mcnn_reference(text, emb_table, conv_params, fc_w, fc_b):
    """Pure-JAX reference mirroring the PyTorch forward (f32)."""
    tokens = text.T
    embedded = emb_table[tokens]                          # [B, S, E]
    pooled = []
    for (w, bias) in conv_params:
        fs = w.shape[0]
        L = embedded.shape[1] - fs + 1
        conv = jnp.zeros((embedded.shape[0], L, w.shape[-1]), jnp.float32)
        for s in range(fs):
            conv = conv + jnp.einsum('ble,ef->blf', embedded[:, s:s + L, :], w[s])
        conv = jax.nn.relu(conv + bias[None, None, :])
        pooled.append(jnp.max(conv, axis=1))
    cat = jnp.concatenate(pooled, axis=1)                 # dropout == identity (eval)
    return cat @ fc_w + fc_b


if __name__ == "__main__":
    vocab_size, embedding_dim = 50, 32
    n_filters, output_dim = 8, 4
    seq_len, batch = 16, 16
    pad_idx = 0

    key = jax.random.PRNGKey(0)
    keys = jax.random.split(key, 10)

    emb_table = 0.1 * jax.random.normal(
        keys[0], (vocab_size, embedding_dim), jnp.float32)
    emb_table = emb_table.at[pad_idx].set(0.0)   # nn.Embedding pad_idx row = 0

    conv_params = []
    for i, fs in enumerate(FILTER_SIZES):
        w = 0.1 * jax.random.normal(
            keys[1 + i], (fs, embedding_dim, n_filters), jnp.float32)
        b = 0.01 * jax.random.normal(keys[4 + i], (n_filters,), jnp.float32)
        conv_params.append((w, b))

    fc_w = 0.1 * jax.random.normal(
        keys[7], (len(FILTER_SIZES) * n_filters, output_dim), jnp.float32)
    fc_b = 0.01 * jax.random.normal(keys[8], (output_dim,), jnp.float32)

    text = jax.random.randint(
        keys[9], (seq_len, batch), 0, vocab_size, dtype=jnp.int32)

    out = mcnn_forward(text, emb_table, conv_params, fc_w, fc_b,
                       block_b=8, matmul_dtype=jnp.bfloat16)
    jax.block_until_ready(out)

    ref = mcnn_reference(text, emb_table, conv_params, fc_w, fc_b)
    assert out.shape == (batch, output_dim), out.shape
    # bf16 MXU operands with f32 accumulation -> loose-but-safe tolerance.
    assert jnp.allclose(out, ref, atol=1e-2, rtol=1e-2), (out, ref)

    print("KERNEL_OK")
</pallas_src>

<mosaic_0001>
module attributes {stable_mosaic.version = 11 : i64} {
  func.func @mcnn_kernel(%arg0: i32, %arg1: memref<8x19x32xbf16, #tpu.memory_space<vmem>>, %arg2: memref<128x128xbf16, #tpu.memory_space<vmem>>, %arg3: memref<1x128xf32, #tpu.memory_space<vmem>>, %arg4: memref<16x128xf32, #tpu.memory_space<vmem>>, %arg5: memref<128x128xbf16, #tpu.memory_space<vmem>>, %arg6: memref<1x128xf32, #tpu.memory_space<vmem>>, %arg7: memref<8x128xf32, #tpu.memory_space<vmem>>) attributes {dimension_semantics = [#tpu.dimension_semantics<parallel>], iteration_bounds = array<i64: 2>, scalar_prefetch = 0 : i64, scratch_operands = 0 : i64, tpu.core_type = #tpu.core_type<tc>, window_params = [{transform_indices = @transform_0, window_bounds = array<i64: 8, 19, 32>}, {pipeline_mode = #tpu.pipeline_mode<synchronous>, transform_indices = @transform_1, window_bounds = array<i64: 128, 128>}, {pipeline_mode = #tpu.pipeline_mode<synchronous>, transform_indices = @transform_2, window_bounds = array<i64: 1, 128>}, {pipeline_mode = #tpu.pipeline_mode<synchronous>, transform_indices = @transform_3, window_bounds = array<i64: 16, 128>}, {pipeline_mode = #tpu.pipeline_mode<synchronous>, transform_indices = @transform_4, window_bounds = array<i64: 128, 128>}, {pipeline_mode = #tpu.pipeline_mode<synchronous>, transform_indices = @transform_5, window_bounds = array<i64: 1, 128>}, {transform_indices = @transform_6, window_bounds = array<i64: 8, 128>}]} {
    %c0 = arith.constant 0 : index
    %c0_0 = arith.constant 0 : index
    %c0_1 = arith.constant 0 : index
    %0 = vector.load %arg1[%c0, %c0_0, %c0_1] : memref<8x19x32xbf16, #tpu.memory_space<vmem>>, vector<8x19x32xbf16>
    %1 = vector.extract_strided_slice %0 {offsets = [0, 0, 0], sizes = [8, 16, 32], strides = [1, 1, 1]} : vector<8x19x32xbf16> to vector<8x16x32xbf16>
    %2 = vector.extract_strided_slice %0 {offsets = [0, 1, 0], sizes = [8, 16, 32], strides = [1, 1, 1]} : vector<8x19x32xbf16> to vector<8x16x32xbf16>
    %3 = vector.extract_strided_slice %0 {offsets = [0, 2, 0], sizes = [8, 16, 32], strides = [1, 1, 1]} : vector<8x19x32xbf16> to vector<8x16x32xbf16>
    %4 = vector.extract_strided_slice %0 {offsets = [0, 3, 0], sizes = [8, 16, 32], strides = [1, 1, 1]} : vector<8x19x32xbf16> to vector<8x16x32xbf16>
    %5 = tpu.concatenate %1, %2, %3, %4 in 2 : vector<8x16x32xbf16>, vector<8x16x32xbf16>, vector<8x16x32xbf16>, vector<8x16x32xbf16> -> vector<8x16x128xbf16>
    %6 = vector.shape_cast %5 : vector<8x16x128xbf16> to vector<128x128xbf16>
    %c0_2 = arith.constant 0 : index
    %c0_3 = arith.constant 0 : index
    %7 = vector.load %arg2[%c0_2, %c0_3] : memref<128x128xbf16, #tpu.memory_space<vmem>>, vector<128x128xbf16>
    %cst = arith.constant dense<0.000000e+00> : vector<128x128xf32>
    %8 = tpu.matmul %6, %7, %cst {dimension_numbers = #tpu.dot_dimension_numbers<[1], [0], [0], [1], [0, 0, 1, 1], [], []>} : vector<128x128xbf16>, vector<128x128xbf16>, vector<128x128xf32> -> vector<128x128xf32>
    %c0_4 = arith.constant 0 : index
    %c0_5 = arith.constant 0 : index
    %9 = vector.load %arg3[%c0_4, %c0_5] : memref<1x128xf32, #tpu.memory_space<vmem>>, vector<1x128xf32>
    %10 = vector.broadcast %9 : vector<1x128xf32> to vector<128x128xf32>
    %11 = arith.addf %8, %10 : vector<128x128xf32>
    %cst_6 = arith.constant 0.000000e+00 : f32
    %12 = vector.broadcast %cst_6 : f32 to vector<128x128xf32>
    %13 = arith.maximumf %11, %12 : vector<128x128xf32>
    %14 = vector.shape_cast %13 : vector<128x128xf32> to vector<8x16x128xf32>
    %c0_7 = arith.constant 0 : index
    %c0_8 = arith.constant 0 : index
    %15 = vector.load %arg4[%c0_7, %c0_8] : memref<16x128xf32, #tpu.memory_space<vmem>>, vector<16x128xf32>
    %16 = vector.shape_cast %15 : vector<16x128xf32> to vector<1x16x128xf32>
    %17 = vector.broadcast %16 : vector<1x16x128xf32> to vector<8x16x128xf32>
    %18 = arith.mulf %14, %17 : vector<8x16x128xf32>
    %cst_9 = arith.constant dense<0xFF800000> : vector<8x128xf32>
    %19 = vector.multi_reduction <maximumf>, %18, %cst_9 [1] : vector<8x16x128xf32> to vector<8x128xf32>
    %20 = arith.truncf %19 : vector<8x128xf32> to vector<8x128xbf16>
    %c0_10 = arith.constant 0 : index
    %c0_11 = arith.constant 0 : index
    %21 = vector.load %arg5[%c0_10, %c0_11] : memref<128x128xbf16, #tpu.memory_space<vmem>>, vector<128x128xbf16>
    %cst_12 = arith.constant dense<0.000000e+00> : vector<8x128xf32>
    %22 = tpu.matmul %20, %21, %cst_12 {dimension_numbers = #tpu.dot_dimension_numbers<[1], [0], [0], [1], [0, 0, 1, 1], [], []>} : vector<8x128xbf16>, vector<128x128xbf16>, vector<8x128xf32> -> vector<8x128xf32>
    %c0_13 = arith.constant 0 : index
    %c0_14 = arith.constant 0 : index
    %23 = vector.load %arg6[%c0_13, %c0_14] : memref<1x128xf32, #tpu.memory_space<vmem>>, vector<1x128xf32>
    %24 = vector.broadcast %23 : vector<1x128xf32> to vector<8x128xf32>
    %25 = arith.addf %22, %24 : vector<8x128xf32>
    %c0_15 = arith.constant 0 : index
    %c0_16 = arith.constant 0 : index
    %26 = vector.load %arg7[%c0_15, %c0_16] : memref<8x128xf32, #tpu.memory_space<vmem>>, vector<8x128xf32>
    tpu.vector_store %arg7[%c0_15, %c0_16], %25 {strides = array<i32>} : memref<8x128xf32, #tpu.memory_space<vmem>>, vector<8x128xf32>,
    return
  }
  func.func @transform_0(%arg0: i32) -> (i32, i32, i32) {
    %c0_i32 = arith.constant 0 : i32
    %c0_i32_0 = arith.constant 0 : i32
    %c0_i32_1 = arith.constant 0 : i32
    return %arg0, %c0_i32, %c0_i32_0 : i32, i32, i32
  }
  func.func @transform_1(%arg0: i32) -> (i32, i32) {
    %c0_i32 = arith.constant 0 : i32
    %c0_i32_0 = arith.constant 0 : i32
    %c0_i32_1 = arith.constant 0 : i32
    return %c0_i32, %c0_i32_0 : i32, i32
  }
  func.func @transform_2(%arg0: i32) -> (i32, i32) {
    %c0_i32 = arith.constant 0 : i32
    %c0_i32_0 = arith.constant 0 : i32
    %c0_i32_1 = arith.constant 0 : i32
    return %c0_i32, %c0_i32_0 : i32, i32
  }
  func.func @transform_3(%arg0: i32) -> (i32, i32) {
    %c0_i32 = arith.constant 0 : i32
    %c0_i32_0 = arith.constant 0 : i32
    %c0_i32_1 = arith.constant 0 : i32
    return %c0_i32, %c0_i32_0 : i32, i32
  }
  func.func @transform_4(%arg0: i32) -> (i32, i32) {
    %c0_i32 = arith.constant 0 : i32
    %c0_i32_0 = arith.constant 0 : i32
    %c0_i32_1 = arith.constant 0 : i32
    return %c0_i32, %c0_i32_0 : i32, i32
  }
  func.func @transform_5(%arg0: i32) -> (i32, i32) {
    %c0_i32 = arith.constant 0 : i32
    %c0_i32_0 = arith.constant 0 : i32
    %c0_i32_1 = arith.constant 0 : i32
    return %c0_i32, %c0_i32_0 : i32, i32
  }
  func.func @transform_6(%arg0: i32) -> (i32, i32) {
    %c0_i32 = arith.constant 0 : i32
    %c0_i32_0 = arith.constant 0 : i32
    return %arg0, %c0_i32 : i32, i32
  }
}

</mosaic_0001>

<llo_original>
// kernel: tpu_custom_call.1
$region0: #{tpu_custom_call.1}
  #allocation0 [shape = 'u32[]', space=smem, size = 0x4, offset = 0x4, fixed_abs, tag = 'smem constant byte address 0x4 - core index']
  #allocation1 [shape = 'u32[72,128]{1,0:T(1,128)}', space=vmem, size = 0x9000, scoped, tag = 'internal scratch']
  %s0 = inlined_call_operand.vmem [shape: bf16[16,19,32], index: 0, kind: input, shape index: {}]
  %s1 = inlined_call_operand.vmem [shape: bf16[128,128], index: 1, kind: input, shape index: {}]
  %s2 = inlined_call_operand.vmem [shape: f32[1,128], index: 2, kind: input, shape index: {}]
  %s3 = inlined_call_operand.vmem [shape: f32[16,128], index: 3, kind: input, shape index: {}]
  %s4 = inlined_call_operand.vmem [shape: bf16[128,128], index: 4, kind: input, shape index: {}]
  %s5 = inlined_call_operand.vmem [shape: f32[1,128], index: 5, kind: input, shape index: {}]
  %s6 = inlined_call_operand.hbm [shape: f32[16,128], index: 6, kind: output, shape index: {}]
  %s7 = sld [smem:[#allocation0]]
  $region57: #{tpu_custom_call.1} parent=0
    _
  %s9 = ssub.s32 1, %s7
  %s10 = scalar_select 0, %s9, %s7
  $region1: #{tpu_custom_call.1} parent=0
    #allocation2 [shape = 'u8[8192]{0}', space=vmem, size = 0x2000, scoped, tag = 'output window, operand 0']
    #allocation3 [shape = 's32[2]{0}', space=sflag, size = 0x8, scoped, tag = 'scoped memory for tpu_custom_call.1']
    %11 = vsyncpa [#allocation3], 0
    %s12 = scalar_lea.sflag [#allocation3], 1
    %13 = vsyncpa %s12, 0
    loop: start=0, step=1, limit=4
    $region2: #{tpu_custom_call.1} parent=1 // loop_pre_header
      _
    $region3: #{tpu_custom_call.1} parent=1 // loop_header
      %s15 = sphi 0, %s19
      %p16 = scmp.ge.s32.totalorder %s15, 4
      %s25 = sphi 0, %s27
      %s28 = sphi 0, %s25
      %s29 = sphi 0, %s28
      %s45 = sphi 0, %s29
      %s49 = sphi 0, %s49
      %s51 = sphi 0, %s49
      %s52 = sphi 0, %s51
      %s66 = sphi 0, %s52
      %s70 = sphi 0, %s70
      %s72 = sphi 0, %s70
      %s73 = sphi 0, %s72
      %s87 = sphi 0, %s73
      %s91 = sphi 0, %s91
      %s93 = sphi 0, %s91
      %s94 = sphi 0, %s93
      %s108 = sphi 0, %s94
      %s112 = sphi 0, %s112
      %s114 = sphi 0, %s112
      %s115 = sphi 0, %s114
      %s129 = sphi 0, %s115
      %s133 = sphi 0, %s133
      %s135 = sphi 0, %s133
      %s136 = sphi 0, %s135
      %s150 = sphi 0, %s136
      %s156 = sphi 0, %s158
      %s159 = sphi 0, %s156
      %s160 = sphi 0, %s159
      %s176 = sphi 0, %s160
    $region4: #{tpu_custom_call.1} parent=1 // loop_header_branch
      %18 = sbr.rel (%p16) target = $region8
    $region5: #{tpu_custom_call.1} parent=1 // loop_body
      %s20 = ssub.s32 %s15, 1
      %s21 = ssub.s32 %s15, 2
      %s22 = sadd.s32 %s15, 1
      %s23 = ssub.s32 %s15, %s22
      %p24 = scmp.eq.s32.totalorder %s23, 0
      %s26 = sadd.s32 %s25, 1
      %s27 = scalar_select %p24, %s25, %s26
      %p30 = pneg %p24
      %p31 = scmp.eq.s32.totalorder %s15, 1
      %p32 = por %p30, %p31
      %p33 = scmp.ne.s32.totalorder %s25, %s28
      %p34 = scmp.eq.s32.totalorder %s15, 0
      %p35 = por %p33, %p34
      %p36 = scmp.ne.s32.totalorder %s25, %s28
      %p37 = scmp.eq.s32.totalorder %s20, 1
      %p38 = por %p36, %p37
      %p39 = scmp.ne.s32.totalorder %s28, %s29
      %p40 = scmp.eq.s32.totalorder %s20, 0
      %p41 = por %p39, %p40
      %p42 = scmp.ne.s32.totalorder %s28, %s29
      %p43 = scmp.eq.s32.totalorder %s21, 1
      %p44 = por %p42, %p43
      %p46 = scmp.ne.s32.totalorder %s29, %s45
      %p47 = scmp.eq.s32.totalorder %s21, 0
      %p48 = por %p46, %p47
      %s50 = sadd.s32 %s49, 1
      %p53 = scmp.eq.s32.totalorder %s15, 1
      %p54 = scmp.ne.s32.totalorder %s49, %s51
      %p55 = scmp.eq.s32.totalorder %s15, 0
      %p56 = por %p54, %p55
      %p57 = scmp.ne.s32.totalorder %s49, %s51
      %p58 = scmp.eq.s32.totalorder %s20, 1
      %p59 = por %p57, %p58
      %p60 = scmp.ne.s32.totalorder %s51, %s52
      %p61 = scmp.eq.s32.totalorder %s20, 0
      %p62 = por %p60, %p61
      %p63 = scmp.ne.s32.totalorder %s51, %s52
      %p64 = scmp.eq.s32.totalorder %s21, 1
      %p65 = por %p63, %p64
      %p67 = scmp.ne.s32.totalorder %s52, %s66
      %p68 = scmp.eq.s32.totalorder %s21, 0
      %p69 = por %p67, %p68
      %s71 = sadd.s32 %s70, 1
      %p74 = scmp.eq.s32.totalorder %s15, 1
      %p75 = scmp.ne.s32.totalorder %s70, %s72
      %p76 = scmp.eq.s32.totalorder %s15, 0
      %p77 = por %p75, %p76
      %p78 = scmp.ne.s32.totalorder %s70, %s72
      %p79 = scmp.eq.s32.totalorder %s20, 1
      %p80 = por %p78, %p79
      %p81 = scmp.ne.s32.totalorder %s72, %s73
      %p82 = scmp.eq.s32.totalorder %s20, 0
      %p83 = por %p81, %p82
      %p84 = scmp.ne.s32.totalorder %s72, %s73
      %p85 = scmp.eq.s32.totalorder %s21, 1
      %p86 = por %p84, %p85
      %p88 = scmp.ne.s32.totalorder %s73, %s87
      %p89 = scmp.eq.s32.totalorder %s21, 0
      %p90 = por %p88, %p89
      %s92 = sadd.s32 %s91, 1
      %p95 = scmp.eq.s32.totalorder %s15, 1
      %p96 = scmp.ne.s32.totalorder %s91, %s93
      %p97 = scmp.eq.s32.totalorder %s15, 0
      %p98 = por %p96, %p97
      %p99 = scmp.ne.s32.totalorder %s91, %s93
      %p100 = scmp.eq.s32.totalorder %s20, 1
      %p101 = por %p99, %p100
      %p102 = scmp.ne.s32.totalorder %s93, %s94
      %p103 = scmp.eq.s32.totalorder %s20, 0
      %p104 = por %p102, %p103
      %p105 = scmp.ne.s32.totalorder %s93, %s94
      %p106 = scmp.eq.s32.totalorder %s21, 1
      %p107 = por %p105, %p106
      %p109 = scmp.ne.s32.totalorder %s94, %s108
      %p110 = scmp.eq.s32.totalorder %s21, 0
      %p111 = por %p109, %p110
      %s113 = sadd.s32 %s112, 1
      %p116 = scmp.eq.s32.totalorder %s15, 1
      %p117 = scmp.ne.s32.totalorder %s112, %s114
      %p118 = scmp.eq.s32.totalorder %s15, 0
      %p119 = por %p117, %p118
      %p120 = scmp.ne.s32.totalorder %s112, %s114
      %p121 = scmp.eq.s32.totalorder %s20, 1
      %p122 = por %p120, %p121
      %p123 = scmp.ne.s32.totalorder %s114, %s115
      %p124 = scmp.eq.s32.totalorder %s20, 0
      %p125 = por %p123, %p124
      %p126 = scmp.ne.s32.totalorder %s114, %s115
      %p127 = scmp.eq.s32.totalorder %s21, 1
      %p128 = por %p126, %p127
      %p130 = scmp.ne.s32.totalorder %s115, %s129
      %p131 = scmp.eq.s32.totalorder %s21, 0
      %p132 = por %p130, %p131
      %s134 = sadd.s32 %s133, 1
      %p137 = scmp.eq.s32.totalorder %s15, 1
      %p138 = scmp.ne.s32.totalorder %s133, %s135
      %p139 = scmp.eq.s32.totalorder %s15, 0
      %p140 = por %p138, %p139
      %p141 = scmp.ne.s32.totalorder %s133, %s135
      %p142 = scmp.eq.s32.totalorder %s20, 1
      %p143 = por %p141, %p142
      %p144 = scmp.ne.s32.totalorder %s135, %s136
      %p145 = scmp.eq.s32.totalorder %s20, 0
      %p146 = por %p144, %p145
      %p147 = scmp.ne.s32.totalorder %s135, %s136
      %p148 = scmp.eq.s32.totalorder %s21, 1
      %p149 = por %p147, %p148
      %p151 = scmp.ne.s32.totalorder %s136, %s150
      %p152 = scmp.eq.s32.totalorder %s21, 0
      %p153 = por %p151, %p152
      %s154 = ssub.s32 %s15, %s22
      %p155 = scmp.eq.s32.totalorder %s154, 0
      %s157 = sadd.s32 %s156, 1
      %s158 = scalar_select %p155, %s156, %s157
      %p161 = pneg %p155
      %p162 = scmp.eq.s32.totalorder %s15, 1
      %p163 = por %p161, %p162
      %p164 = scmp.ne.s32.totalorder %s156, %s159
      %p165 = scmp.eq.s32.totalorder %s15, 0
      %p166 = por %p164, %p165
      %p167 = scmp.ne.s32.totalorder %s156, %s159
      %p168 = scmp.eq.s32.totalorder %s20, 1
      %p169 = por %p167, %p168
      %p170 = scmp.ne.s32.totalorder %s159, %s160
      %p171 = scmp.eq.s32.totalorder %s20, 0
      %p172 = por %p170, %p171
      %p173 = scmp.ne.s32.totalorder %s159, %s160
      %p174 = scmp.eq.s32.totalorder %s21, 1
      %p175 = por %p173, %p174
      %p177 = scmp.ne.s32.totalorder %s160, %s176
      %p178 = scmp.eq.s32.totalorder %s21, 0
      %p179 = por %p177, %p178
      %p180 = scmp.le.s32.totalorder 1, %s15
      %p181 = scmp.lt.s32.totalorder %s15, 3
      %p182 = pnand %p180, %p181
      %p183 = pneg %p182
      // Predicated region
      $region9: #{tpu_custom_call.1} parent=5 // pred_check
        _
      $region10: #{tpu_custom_call.1} parent=5 // pred_check_branch
        %185 = sbr.rel (%p182) target = $region12
      $region11: #{tpu_custom_call.1} parent=5 // pred_region
        %s186 = ssub.s32 %s15, 1
        // Predicated region
        $region13: #{tpu_custom_call.1} parent=11 // pred_check
          %p187 = pneg %p62
        $region14: #{tpu_custom_call.1} parent=11 // pred_check_branch
          %189 = sbr.rel (%p187) target = $region16
        $region15: #{tpu_custom_call.1} parent=11 // pred_region
          _
        $region16: #{tpu_custom_call.1} parent=11 // pred_fallthru
          _
        // Predicated region
        $region17: #{tpu_custom_call.1} parent=11 // pred_check
          %p190 = pneg %p83
        $region18: #{tpu_custom_call.1} parent=11 // pred_check_branch
          %192 = sbr.rel (%p190) target = $region20
        $region19: #{tpu_custom_call.1} parent=11 // pred_region
          _
        $region20: #{tpu_custom_call.1} parent=11 // pred_fallthru
          _
        // Predicated region
        $region21: #{tpu_custom_call.1} parent=11 // pred_check
          %p193 = pneg %p104
        $region22: #{tpu_custom_call.1} parent=11 // pred_check_branch
          %195 = sbr.rel (%p193) target = $region24
        $region23: #{tpu_custom_call.1} parent=11 // pred_region
          _
        $region24: #{tpu_custom_call.1} parent=11 // pred_fallthru
          _
        // Predicated region
        $region25: #{tpu_custom_call.1} parent=11 // pred_check
          %p196 = pneg %p125
        $region26: #{tpu_custom_call.1} parent=11 // pred_check_branch
          %198 = sbr.rel (%p196) target = $region28
        $region27: #{tpu_custom_call.1} parent=11 // pred_region
          _
        $region28: #{tpu_custom_call.1} parent=11 // pred_fallthru
          _
        // Predicated region
        $region29: #{tpu_custom_call.1} parent=11 // pred_check
          %p199 = pneg %p146
        $region30: #{tpu_custom_call.1} parent=11 // pred_check_branch
          %201 = sbr.rel (%p199) target = $region32
        $region31: #{tpu_custom_call.1} parent=11 // pred_region
          _
        $region32: #{tpu_custom_call.1} parent=11 // pred_fallthru
          _
      $region12: #{tpu_custom_call.1} parent=5 // pred_fallthru
        _
      %p202 = scmp.lt.s32.totalorder %s15, 2
      // Predicated region
      $region33: #{tpu_custom_call.1} parent=5 // pred_check
        %p203 = pneg %p202
      $region34: #{tpu_custom_call.1} parent=5 // pred_check_branch
        %205 = sbr.rel (%p203) target = $region36
      $region35: #{tpu_custom_call.1} parent=5 // pred_region
        // Predicated region
        $region37: #{tpu_custom_call.1} parent=35 // pred_check
          %p206 = pneg %p35
        $region38: #{tpu_custom_call.1} parent=35 // pred_check_branch
          %208 = sbr.rel (%p206) target = $region40
        $region39: #{tpu_custom_call.1} parent=35 // pred_region
          %s209 = smul.u32 8, %s15
          %p210 = scmp.lt.s32.totalorder %s209, 15
          %s211 = scalar_select %p210, %s209, 15
          %s212 = smul.addr %s211, 3
          %s213 = smul.addr %s212, 4
          %s214 = scalar_lea.vmem %s0, %s213
          %s215 = smul.u32 8, %s15
        $region40: #{tpu_custom_call.1} parent=35 // pred_fallthru
          _
      $region36: #{tpu_custom_call.1} parent=5 // pred_fallthru
        _
      %p216 = scmp.le.s32.totalorder 1, %s15
      %p217 = scmp.lt.s32.totalorder %s15, 3
      %p218 = pnand %p216, %p217
      %p219 = pneg %p218
      // Predicated region
      $region41: #{tpu_custom_call.1} parent=5 // pred_check
        _
      $region42: #{tpu_custom_call.1} parent=5 // pred_check_branch
        %221 = sbr.rel (%p218) target = $region44
      $region43: #{tpu_custom_call.1} parent=5 // pred_region
        %s222 = ssub.s32 %s15, 1
        %s223 = smul.u32 8, %s20
        %p224 = scmp.lt.s32.totalorder %s223, 15
        %s225 = scalar_select %p224, %s223, 15
        %s226 = smul.addr %s225, 3
        %s227 = smul.addr %s226, 4
        %s228 = scalar_lea.vmem %s0, %s227
        %p229 = pneg %p41
        %p230 = pneg %p38
        %p231 = pneg %p62
        %p232 = pneg %p59
        %p233 = pneg %p83
        %p234 = pneg %p80
        %p235 = pneg %p104
        %p236 = pneg %p101
        %p237 = pneg %p125
        %p238 = pneg %p122
        %p239 = pneg %p146
        %p240 = pneg %p143
        %p241 = pneg %p172
        %p242 = pneg %p169
        %s243 = sand.u32 %s159, 1
        %s244 = scalar_lea.sflag [#allocation3], %s243
        %s245 = sand.u32 %s159, 1
        %s246 = smul.addr %s245, 8
        %s247 = scalar_lea.vmem [#allocation2], %s246
        %s248 = smul.u32 8, %s20
        %p249 = scmp.lt.s32.totalorder %s248, 15
        %s250 = scalar_select %p249, %s248, 15
        %s251 = smul.addr %s250, 3
        %s252 = smul.addr %s251, 4
        %s253 = scalar_lea.vmem %s0, %s252
        %s254 = smul.u32 8, %s20
        %v255 = vld [vmem:[%s253] sm:$0xf]
        %v256 = vld [vmem:[%s253 + $0x4] sm:$0xf]
        %v257 = vld [vmem:[%s253 + $0x8] sm:$0x3]
        %v258 = vld [vmem:[%s253 + $0xc] sm:$0xf]
        %v259 = vld [vmem:[%s253 + $0x10] sm:$0xf]
        %v260 = vld [vmem:[%s253 + $0x14] sm:$0x3]
        %v261 = vld [vmem:[%s253 + $0x18] sm:$0xf]
        %v262 = vld [vmem:[%s253 + $0x1c] sm:$0xf]
        %v263 = vld [vmem:[%s253 + $0x20] sm:$0x3]
        %v264 = vld [vmem:[%s253 + $0x24] sm:$0xf]
        %v265 = vld [vmem:[%s253 + $0x28] sm:$0xf]
        %v266 = vld [vmem:[%s253 + $0x2c] sm:$0x3]
        %v267 = vld [vmem:[%s253 + $0x30] sm:$0xf]
        %v268 = vld [vmem:[%s253 + $0x34] sm:$0xf]
        %v269 = vld [vmem:[%s253 + $0x38] sm:$0x3]
        %v270 = vld [vmem:[%s253 + $0x3c] sm:$0xf]
        %v271 = vld [vmem:[%s253 + $0x40] sm:$0xf]
        %v272 = vld [vmem:[%s253 + $0x44] sm:$0x3]
        %v273 = vld [vmem:[%s253 + $0x48] sm:$0xf]
        %v274 = vld [vmem:[%s253 + $0x4c] sm:$0xf]
        %v275 = vld [vmem:[%s253 + $0x50] sm:$0x3]
        %v276 = vld [vmem:[%s253 + $0x54] sm:$0xf]
        %v277 = vld [vmem:[%s253 + $0x58] sm:$0xf]
        %v278 = vld [vmem:[%s253 + $0x5c] sm:$0x3]
        %v295 = vunpack.c.l.b16 %v255
        %v296 = vunpack.c.l.b16 %v256
        %v297 = vunpack.c.l.b16 %v258
        %v298 = vunpack.c.l.b16 %v259
        %v299 = vunpack.c.l.b16 %v261
        %v300 = vunpack.c.l.b16 %v262
        %v301 = vunpack.c.l.b16 %v264
        %v302 = vunpack.c.l.b16 %v265
        %v303 = vunpack.c.l.b16 %v267
        %v304 = vunpack.c.l.b16 %v268
        %v305 = vunpack.c.l.b16 %v270
        %v306 = vunpack.c.l.b16 %v271
        %v307 = vunpack.c.l.b16 %v273
        %v308 = vunpack.c.l.b16 %v274
        %v309 = vunpack.c.l.b16 %v276
        %v310 = vunpack.c.l.b16 %v277
        %v311 = vpack.c.b16 %v296, %v295
        %v312 = vpack.c.b16 %v298, %v297
        %v313 = vpack.c.b16 %v300, %v299
        %v314 = vpack.c.b16 %v302, %v301
        %v315 = vpack.c.b16 %v304, %v303
        %v316 = vpack.c.b16 %v306, %v305
        %v317 = vpack.c.b16 %v308, %v307
        %v318 = vpack.c.b16 %v310, %v309
        %v327 = vunpack.c.l.b16 %v257
        %v328 = vunpack.c.l.b16 %v260
        %v329 = vunpack.c.l.b16 %v263
        %v330 = vunpack.c.l.b16 %v266
        %v331 = vunpack.c.l.b16 %v269
        %v332 = vunpack.c.l.b16 %v272
        %v333 = vunpack.c.l.b16 %v275
        %v334 = vunpack.c.l.b16 %v278
        %v335 = vpack.c.b16 %v327, %v327
        %v336 = vpack.c.b16 %v328, %v328
        %v337 = vpack.c.b16 %v329, %v329
        %v338 = vpack.c.b16 %v330, %v330
        %v339 = vpack.c.b16 %v331, %v331
        %v340 = vpack.c.b16 %v332, %v332
        %v341 = vpack.c.b16 %v333, %v333
        %v342 = vpack.c.b16 %v334, %v334
        %vm343 = vsmask.f32 7424
        %v345 = vshrl.u32 %v311, 16
        %v347 = vshll.u32 %v311, 16
        %v349 = vrot.slane %v347, 1
        %v350 = vor.u32 %v345, %v349
        %v352 = vshll.u32 %v335, 16
        %v354 = vrot.slane %v352, 1
        %v355 = vsel %vm343, %v350, %v354
        %v357 = vshrl.u32 %v312, 16
        %v359 = vshll.u32 %v312, 16
        %v361 = vrot.slane %v359, 1
        %v362 = vor.u32 %v357, %v361
        %v364 = vshll.u32 %v336, 16
        %v366 = vrot.slane %v364, 1
        %v367 = vsel %vm343, %v362, %v366
        %v369 = vshrl.u32 %v313, 16
        %v371 = vshll.u32 %v313, 16
        %v373 = vrot.slane %v371, 1
        %v374 = vor.u32 %v369, %v373
        %v376 = vshll.u32 %v337, 16
        %v378 = vrot.slane %v376, 1
        %v379 = vsel %vm343, %v374, %v378
        %v381 = vshrl.u32 %v314, 16
        %v383 = vshll.u32 %v314, 16
        %v385 = vrot.slane %v383, 1
        %v386 = vor.u32 %v381, %v385
        %v388 = vshll.u32 %v338, 16
        %v390 = vrot.slane %v388, 1
        %v391 = vsel %vm343, %v386, %v390
        %v393 = vshrl.u32 %v315, 16
        %v395 = vshll.u32 %v315, 16
        %v397 = vrot.slane %v395, 1
        %v398 = vor.u32 %v393, %v397
        %v400 = vshll.u32 %v339, 16
        %v402 = vrot.slane %v400, 1
        %v403 = vsel %vm343, %v398, %v402
        %v405 = vshrl.u32 %v316, 16
        %v407 = vshll.u32 %v316, 16
        %v409 = vrot.slane %v407, 1
        %v410 = vor.u32 %v405, %v409
        %v412 = vshll.u32 %v340, 16
        %v414 = vrot.slane %v412, 1
        %v415 = vsel %vm343, %v410, %v414
        %v417 = vshrl.u32 %v317, 16
        %v419 = vshll.u32 %v317, 16
        %v421 = vrot.slane %v419, 1
        %v422 = vor.u32 %v417, %v421
        %v424 = vshll.u32 %v341, 16
        %v426 = vrot.slane %v424, 1
        %v427 = vsel %vm343, %v422, %v426
        %v429 = vshrl.u32 %v318, 16
        %v431 = vshll.u32 %v318, 16
        %v433 = vrot.slane %v431, 1
        %v434 = vor.u32 %v429, %v433
        %v436 = vshll.u32 %v342, 16
        %v438 = vrot.slane %v436, 1
        %v439 = vsel %vm343, %v434, %v438
        %440 = vrot.lane.b32.xlu0 %v355, 32
        %v441 = vpop.permute.xlu0 %440
        %442 = vrot.lane.b32.xlu0 %v367, 32
        %v443 = vpop.permute.xlu0 %442
        %444 = vrot.lane.b32.xlu0 %v379, 32
        %v445 = vpop.permute.xlu0 %444
        %446 = vrot.lane.b32.xlu0 %v391, 32
        %v447 = vpop.permute.xlu0 %446
        %448 = vrot.lane.b32.xlu0 %v403, 32
        %v449 = vpop.permute.xlu0 %448
        %450 = vrot.lane.b32.xlu0 %v415, 32
        %v451 = vpop.permute.xlu0 %450
        %452 = vrot.lane.b32.xlu0 %v427, 32
        %v453 = vpop.permute.xlu0 %452
        %454 = vrot.lane.b32.xlu0 %v439, 32
        %v455 = vpop.permute.xlu0 %454
        %vm456 = vcmask 1046528
        %v457 = vrot.slane %v311, 1
        %v458 = vrot.slane %v335, 1
        %v459 = vsel %vm456, %v457, %v458
        %v460 = vrot.slane %v312, 1
        %v461 = vrot.slane %v336, 1
        %v462 = vsel %vm456, %v460, %v461
        %v463 = vrot.slane %v313, 1
        %v464 = vrot.slane %v337, 1
        %v465 = vsel %vm456, %v463, %v464
        %v466 = vrot.slane %v314, 1
        %v467 = vrot.slane %v338, 1
        %v468 = vsel %vm456, %v466, %v467
        %v469 = vrot.slane %v315, 1
        %v470 = vrot.slane %v339, 1
        %v471 = vsel %vm456, %v469, %v470
        %v472 = vrot.slane %v316, 1
        %v473 = vrot.slane %v340, 1
        %v474 = vsel %vm456, %v472, %v473
        %v475 = vrot.slane %v317, 1
        %v476 = vrot.slane %v341, 1
        %v477 = vsel %vm456, %v475, %v476
        %v478 = vrot.slane %v318, 1
        %v479 = vrot.slane %v342, 1
        %v480 = vsel %vm456, %v478, %v479
        %481 = vrot.lane.b32.xlu0 %v459, 64
        %v482 = vpop.permute.xlu0 %481
        %483 = vrot.lane.b32.xlu0 %v462, 64
        %v484 = vpop.permute.xlu0 %483
        %485 = vrot.lane.b32.xlu0 %v465, 64
        %v486 = vpop.permute.xlu0 %485
        %487 = vrot.lane.b32.xlu0 %v468, 64
        %v488 = vpop.permute.xlu0 %487
        %489 = vrot.lane.b32.xlu0 %v471, 64
        %v490 = vpop.permute.xlu0 %489
        %491 = vrot.lane.b32.xlu0 %v474, 64
        %v492 = vpop.permute.xlu0 %491
        %493 = vrot.lane.b32.xlu0 %v477, 64
        %v494 = vpop.permute.xlu0 %493
        %495 = vrot.lane.b32.xlu0 %v480, 64
        %v496 = vpop.permute.xlu0 %495
        %vm497 = vsmask.f32 6400
        %v498 = vrot.slane %v345, 1
        %v499 = vrot.slane %v347, 2
        %v500 = vor.u32 %v498, %v499
        %v501 = vshrl.u32 %v335, 16
        %v503 = vrot.slane %v501, 1
        %v504 = vrot.slane %v352, 2
        %v505 = vor.u32 %v503, %v504
        %v506 = vsel %vm497, %v500, %v505
        %v507 = vrot.slane %v357, 1
        %v508 = vrot.slane %v359, 2
        %v509 = vor.u32 %v507, %v508
        %v510 = vshrl.u32 %v336, 16
        %v512 = vrot.slane %v510, 1
        %v513 = vrot.slane %v364, 2
        %v514 = vor.u32 %v512, %v513
        %v515 = vsel %vm497, %v509, %v514
        %v516 = vrot.slane %v369, 1
        %v517 = vrot.slane %v371, 2
        %v518 = vor.u32 %v516, %v517
        %v519 = vshrl.u32 %v337, 16
        %v521 = vrot.slane %v519, 1
        %v522 = vrot.slane %v376, 2
        %v523 = vor.u32 %v521, %v522
        %v524 = vsel %vm497, %v518, %v523
        %v525 = vrot.slane %v381, 1
        %v526 = vrot.slane %v383, 2
        %v527 = vor.u32 %v525, %v526
        %v528 = vshrl.u32 %v338, 16
        %v530 = vrot.slane %v528, 1
        %v531 = vrot.slane %v388, 2
        %v532 = vor.u32 %v530, %v531
        %v533 = vsel %vm497, %v527, %v532
        %v534 = vrot.slane %v393, 1
        %v535 = vrot.slane %v395, 2
        %v536 = vor.u32 %v534, %v535
        %v537 = vshrl.u32 %v339, 16
        %v539 = vrot.slane %v537, 1
        %v540 = vrot.slane %v400, 2
        %v541 = vor.u32 %v539, %v540
        %v542 = vsel %vm497, %v536, %v541
        %v543 = vrot.slane %v405, 1
        %v544 = vrot.slane %v407, 2
        %v545 = vor.u32 %v543, %v544
        %v546 = vshrl.u32 %v340, 16
        %v548 = vrot.slane %v546, 1
        %v549 = vrot.slane %v412, 2
        %v550 = vor.u32 %v548, %v549
        %v551 = vsel %vm497, %v545, %v550
        %v552 = vrot.slane %v417, 1
        %v553 = vrot.slane %v419, 2
        %v554 = vor.u32 %v552, %v553
        %v555 = vshrl.u32 %v341, 16
        %v557 = vrot.slane %v555, 1
        %v558 = vrot.slane %v424, 2
        %v559 = vor.u32 %v557, %v558
        %v560 = vsel %vm497, %v554, %v559
        %v561 = vrot.slane %v429, 1
        %v562 = vrot.slane %v431, 2
        %v563 = vor.u32 %v561, %v562
        %v564 = vshrl.u32 %v342, 16
        %v566 = vrot.slane %v564, 1
        %v567 = vrot.slane %v436, 2
        %v568 = vor.u32 %v566, %v567
        %v569 = vsel %vm497, %v563, %v568
        %570 = vrot.lane.b32.xlu0 %v506, 96
        %v571 = vpop.permute.xlu0 %570
        %572 = vrot.lane.b32.xlu0 %v515, 96
        %v573 = vpop.permute.xlu0 %572
        %574 = vrot.lane.b32.xlu0 %v524, 96
        %v575 = vpop.permute.xlu0 %574
        %576 = vrot.lane.b32.xlu0 %v533, 96
        %v577 = vpop.permute.xlu0 %576
        %578 = vrot.lane.b32.xlu0 %v542, 96
        %v579 = vpop.permute.xlu0 %578
        %580 = vrot.lane.b32.xlu0 %v551, 96
        %v581 = vpop.permute.xlu0 %580
        %582 = vrot.lane.b32.xlu0 %v560, 96
        %v583 = vpop.permute.xlu0 %582
        %584 = vrot.lane.b32.xlu0 %v569, 96
        %v585 = vpop.permute.xlu0 %584
        %vm586 = vcmask 261120
        %v588 = vsel %vm586, %v311, %v441
        %v590 = vsel %vm586, %v312, %v443
        %v592 = vsel %vm586, %v313, %v445
        %v594 = vsel %vm586, %v314, %v447
        %v596 = vsel %vm586, %v315, %v449
        %v598 = vsel %vm586, %v316, %v451
        %v600 = vsel %vm586, %v317, %v453
        %v602 = vsel %vm586, %v318, %v455
        %vm603 = vcmask 523264
        %v605 = vsel %vm603, %v588, %v482
        %v607 = vsel %vm603, %v590, %v484
        %v609 = vsel %vm603, %v592, %v486
        %v611 = vsel %vm603, %v594, %v488
        %v613 = vsel %vm603, %v596, %v490
        %v615 = vsel %vm603, %v598, %v492
        %v617 = vsel %vm603, %v600, %v494
        %v619 = vsel %vm603, %v602, %v496
        %vm620 = vcmask 785408
        %v622 = vsel %vm620, %v605, %v571
        %v625 = vsel %vm620, %v607, %v573
        %v628 = vsel %vm620, %v609, %v575
        %v631 = vsel %vm620, %v611, %v577
        %v634 = vsel %vm620, %v613, %v579
        %v637 = vsel %vm620, %v615, %v581
        %v640 = vsel %vm620, %v617, %v583
        %v643 = vsel %vm620, %v619, %v585
        %v645 = vld [vmem:[%s1] sm:$0xf]
        %v646 = vld [vmem:[%s1 + $0x4] sm:$0xf]
        %v647 = vld [vmem:[%s1 + $0x8] sm:$0xf]
        %v648 = vld [vmem:[%s1 + $0xc] sm:$0xf]
        %v649 = vld [vmem:[%s1 + $0x10] sm:$0xf]
        %v650 = vld [vmem:[%s1 + $0x14] sm:$0xf]
        %v651 = vld [vmem:[%s1 + $0x18] sm:$0xf]
        %v652 = vld [vmem:[%s1 + $0x1c] sm:$0xf]
        %v653 = vld [vmem:[%s1 + $0x20] sm:$0xf]
        %v654 = vld [vmem:[%s1 + $0x24] sm:$0xf]
        %v655 = vld [vmem:[%s1 + $0x28] sm:$0xf]
        %v656 = vld [vmem:[%s1 + $0x2c] sm:$0xf]
        %v657 = vld [vmem:[%s1 + $0x30] sm:$0xf]
        %v658 = vld [vmem:[%s1 + $0x34] sm:$0xf]
        %v659 = vld [vmem:[%s1 + $0x38] sm:$0xf]
        %v660 = vld [vmem:[%s1 + $0x3c] sm:$0xf]
        %v661 = vld [vmem:[%s2] sm:$0x1]
        %v663 = vperm.slane %v661, 0
        %v681 = vunpack.c.l.b16 %v645
        %v682 = vunpack.c.l.b16 %v646
        %v683 = vunpack.c.l.b16 %v647
        %v684 = vunpack.c.l.b16 %v648
        %v685 = vunpack.c.l.b16 %v649
        %v686 = vunpack.c.l.b16 %v650
        %v687 = vunpack.c.l.b16 %v651
        %v688 = vunpack.c.l.b16 %v652
        %v689 = vunpack.c.l.b16 %v653
        %v690 = vunpack.c.l.b16 %v654
        %v691 = vunpack.c.l.b16 %v655
        %v692 = vunpack.c.l.b16 %v656
        %v693 = vunpack.c.l.b16 %v657
        %v694 = vunpack.c.l.b16 %v658
        %v695 = vunpack.c.l.b16 %v659
        %v696 = vunpack.c.l.b16 %v660
        %v697 = vpack.c.b16 %v682, %v681
        %v698 = vpack.c.b16 %v684, %v683
        %v699 = vpack.c.b16 %v686, %v685
        %v700 = vpack.c.b16 %v688, %v687
        %v701 = vpack.c.b16 %v690, %v689
        %v702 = vpack.c.b16 %v692, %v691
        %v703 = vpack.c.b16 %v694, %v693
        %v704 = vpack.c.b16 %v696, %v695
        %713 = vmatpush.bf16.msra.mxu0 %v704
        %714 = vmatpush.bf16.msra.mxu0 %v703
        %715 = vmatpush.bf16.msra.mxu0 %v702
        %716 = vmatpush.bf16.msra.mxu0 %v701
        %717 = vmatpush.bf16.msra.mxu0 %v700
        %718 = vmatpush.bf16.msra.mxu0 %v699
        %719 = vmatpush.bf16.msra.mxu0 %v698
        %720 = vmatpush.bf16.msra.mxu0 %v697
        %721 = vmatmul.bf16.gmra.mxu0 %v622
        %v722 = vpop.f32.mrf.mxu0
        %v723 = vadd.f32 %v663, %v722
        %v724 = vpop.f32.mrf.mxu0
        %v725 = vadd.f32 %v663, %v724
        %726 = vmatmul.bf16.gmra.mxu0 %v625
        %v727 = vpop.f32.mrf.mxu0
        %v728 = vadd.f32 %v663, %v727
        %v729 = vpop.f32.mrf.mxu0
        %v730 = vadd.f32 %v663, %v729
        %731 = vmatmul.bf16.gmra.mxu0 %v628
        %v732 = vpop.f32.mrf.mxu0
        %v733 = vadd.f32 %v663, %v732
        %v734 = vpop.f32.mrf.mxu0
        %v735 = vadd.f32 %v663, %v734
        %736 = vmatmul.bf16.gmra.mxu0 %v631
        %v737 = vpop.f32.mrf.mxu0
        %v738 = vadd.f32 %v663, %v737
        %v739 = vpop.f32.mrf.mxu0
        %v740 = vadd.f32 %v663, %v739
        %741 = vmatmul.bf16.gmra.mxu0 %v634
        %v742 = vpop.f32.mrf.mxu0
        %v743 = vadd.f32 %v663, %v742
        %v744 = vpop.f32.mrf.mxu0
        %v745 = vadd.f32 %v663, %v744
        %746 = vmatmul.bf16.gmra.mxu0 %v637
        %v747 = vpop.f32.mrf.mxu0
        %v748 = vadd.f32 %v663, %v747
        %v749 = vpop.f32.mrf.mxu0
        %v750 = vadd.f32 %v663, %v749
        %751 = vmatmul.bf16.gmra.mxu0 %v640
        %v752 = vpop.f32.mrf.mxu0
        %v753 = vadd.f32 %v663, %v752
        %v754 = vpop.f32.mrf.mxu0
        %v755 = vadd.f32 %v663, %v754
        %756 = vmatmul.bf16.gmra.mxu0 %v643
        %v757 = vpop.f32.mrf.mxu0
        %v758 = vadd.f32 %v663, %v757
        %v759 = vpop.f32.mrf.mxu0
        %v760 = vadd.f32 %v663, %v759
        %761 = vdwg.mxu0
        %v762 = vmax.f32 %v723, 0.0
        %v763 = vmax.f32 %v725, 0.0
        %v764 = vmax.f32 %v728, 0.0
        %v765 = vmax.f32 %v730, 0.0
        %v766 = vmax.f32 %v733, 0.0
        %v767 = vmax.f32 %v735, 0.0
        %v768 = vmax.f32 %v738, 0.0
        %v769 = vmax.f32 %v740, 0.0
        %v770 = vmax.f32 %v743, 0.0
        %v771 = vmax.f32 %v745, 0.0
        %v772 = vmax.f32 %v748, 0.0
        %v773 = vmax.f32 %v750, 0.0
        %v774 = vmax.f32 %v753, 0.0
        %v775 = vmax.f32 %v755, 0.0
        %v776 = vmax.f32 %v758, 0.0
        %v777 = vmax.f32 %v760, 0.0
        %v778 = vld [vmem:[%s3] sm:$0xff]
        %v779 = vld [vmem:[%s3 + $0x8] sm:$0xff]
        %v780 = vmul.f32 %v762, %v778
        %v781 = vmul.f32 %v763, %v779
        %v782 = vmul.f32 %v764, %v778
        %v783 = vmul.f32 %v765, %v779
        %v784 = vmul.f32 %v766, %v778
        %v785 = vmul.f32 %v767, %v779
        %v786 = vmul.f32 %v768, %v778
        %v787 = vmul.f32 %v769, %v779
        %v788 = vmul.f32 %v770, %v778
        %v789 = vmul.f32 %v771, %v779
        %v790 = vmul.f32 %v772, %v778
        %v791 = vmul.f32 %v773, %v779
        %v792 = vmul.f32 %v774, %v778
        %v793 = vmul.f32 %v775, %v779
        %v794 = vmul.f32 %v776, %v778
        %v795 = vmul.f32 %v777, %v779
        %v796 = vmax.f32 %v780, %v781
        %v797 = vrot.slane %v796, 4
        %v798 = vmax.f32 %v796, %v797
        %v799 = vrot.slane %v798, 2
        %v800 = vmax.f32 %v798, %v799
        %v801 = vrot.slane %v800, 1
        %v802 = vmax.f32 %v800, %v801
        %v803 = vmax.f32 %v782, %v783
        %v804 = vrot.slane %v803, 4
        %v805 = vmax.f32 %v803, %v804
        %v806 = vrot.slane %v805, 2
        %v807 = vmax.f32 %v805, %v806
        %v808 = vrot.slane %v807, 1
        %v809 = vmax.f32 %v807, %v808
        %v810 = vmax.f32 %v784, %v785
        %v811 = vrot.slane %v810, 4
        %v812 = vmax.f32 %v810, %v811
        %v813 = vrot.slane %v812, 2
        %v814 = vmax.f32 %v812, %v813
        %v815 = vrot.slane %v814, 1
        %v816 = vmax.f32 %v814, %v815
        %v817 = vmax.f32 %v786, %v787
        %v818 = vrot.slane %v817, 4
        %v819 = vmax.f32 %v817, %v818
        %v820 = vrot.slane %v819, 2
        %v821 = vmax.f32 %v819, %v820
        %v822 = vrot.slane %v821, 1
        %v823 = vmax.f32 %v821, %v822
        %v824 = vmax.f32 %v788, %v789
        %v825 = vrot.slane %v824, 4
        %v826 = vmax.f32 %v824, %v825
        %v827 = vrot.slane %v826, 2
        %v828 = vmax.f32 %v826, %v827
        %v829 = vrot.slane %v828, 1
        %v830 = vmax.f32 %v828, %v829
        %v831 = vmax.f32 %v790, %v791
        %v832 = vrot.slane %v831, 4
        %v833 = vmax.f32 %v831, %v832
        %v834 = vrot.slane %v833, 2
        %v835 = vmax.f32 %v833, %v834
        %v836 = vrot.slane %v835, 1
        %v837 = vmax.f32 %v835, %v836
        %v838 = vmax.f32 %v792, %v793
        %v839 = vrot.slane %v838, 4
        %v840 = vmax.f32 %v838, %v839
        %v841 = vrot.slane %v840, 2
        %v842 = vmax.f32 %v840, %v841
        %v843 = vrot.slane %v842, 1
        %v844 = vmax.f32 %v842, %v843
        %v845 = vmax.f32 %v794, %v795
        %v846 = vrot.slane %v845, 4
        %v847 = vmax.f32 %v845, %v846
        %v848 = vrot.slane %v847, 2
        %v849 = vmax.f32 %v847, %v848
        %v850 = vrot.slane %v849, 1
        %v851 = vmax.f32 %v849, %v850
        %v852 = vpack.c.bf16 %v802, %v802
        %v853 = vpack.c.bf16 %v809, %v809
        %v854 = vpack.c.bf16 %v816, %v816
        %v855 = vpack.c.bf16 %v823, %v823
        %v856 = vpack.c.bf16 %v830, %v830
        %v857 = vpack.c.bf16 %v837, %v837
        %v858 = vpack.c.bf16 %v844, %v844
        %v859 = vpack.c.bf16 %v851, %v851
        %v860 = vld [vmem:[%s4] sm:$0xf]
        %v861 = vld [vmem:[%s4 + $0x4] sm:$0xf]
        %v862 = vld [vmem:[%s4 + $0x8] sm:$0xf]
        %v863 = vld [vmem:[%s4 + $0xc] sm:$0xf]
        %v864 = vld [vmem:[%s4 + $0x10] sm:$0xf]
        %v865 = vld [vmem:[%s4 + $0x14] sm:$0xf]
        %v866 = vld [vmem:[%s4 + $0x18] sm:$0xf]
        %v867 = vld [vmem:[%s4 + $0x1c] sm:$0xf]
        %v868 = vld [vmem:[%s4 + $0x20] sm:$0xf]
        %v869 = vld [vmem:[%s4 + $0x24] sm:$0xf]
        %v870 = vld [vmem:[%s4 + $0x28] sm:$0xf]
        %v871 = vld [vmem:[%s4 + $0x2c] sm:$0xf]
        %v872 = vld [vmem:[%s4 + $0x30] sm:$0xf]
        %v873 = vld [vmem:[%s4 + $0x34] sm:$0xf]
        %v874 = vld [vmem:[%s4 + $0x38] sm:$0xf]
        %v875 = vld [vmem:[%s4 + $0x3c] sm:$0xf]
        %v876 = vld [vmem:[%s5] sm:$0x1]
        %v878 = vperm.slane %v876, 0
        %v888 = vunpack.c.l.b16 %v852
        %v889 = vunpack.c.l.b16 %v853
        %v890 = vunpack.c.l.b16 %v854
        %v891 = vunpack.c.l.b16 %v855
        %v892 = vunpack.c.l.b16 %v856
        %v893 = vunpack.c.l.b16 %v857
        %v894 = vunpack.c.l.b16 %v858
        %v895 = vunpack.c.l.b16 %v859
        %vm896 = vcmask 1041409
        %v897 = vsel %vm896, %v889, %v888
        %vm898 = vcmask 1042434
        %v899 = vsel %vm898, %v890, %v897
        %vm900 = vcmask 1043459
        %v901 = vsel %vm900, %v891, %v899
        %vm902 = vcmask 1044484
        %v903 = vsel %vm902, %v892, %v901
        %vm904 = vcmask 1045509
        %v905 = vsel %vm904, %v893, %v903
        %vm906 = vcmask 1046534
        %v907 = vsel %vm906, %v894, %v905
        %vm908 = vcmask 1047559
        %v909 = vsel %vm908, %v895, %v907
        %v910 = vpack.c.b16 %v909, %v909
        %v928 = vunpack.c.l.b16 %v860
        %v929 = vunpack.c.l.b16 %v861
        %v930 = vunpack.c.l.b16 %v862
        %v931 = vunpack.c.l.b16 %v863
        %v932 = vunpack.c.l.b16 %v864
        %v933 = vunpack.c.l.b16 %v865
        %v934 = vunpack.c.l.b16 %v866
        %v935 = vunpack.c.l.b16 %v867
        %v936 = vunpack.c.l.b16 %v868
        %v937 = vunpack.c.l.b16 %v869
        %v938 = vunpack.c.l.b16 %v870
        %v939 = vunpack.c.l.b16 %v871
        %v940 = vunpack.c.l.b16 %v872
        %v941 = vunpack.c.l.b16 %v873
        %v942 = vunpack.c.l.b16 %v874
        %v943 = vunpack.c.l.b16 %v875
        %v944 = vpack.c.b16 %v929, %v928
        %v945 = vpack.c.b16 %v931, %v930
        %v946 = vpack.c.b16 %v933, %v932
        %v947 = vpack.c.b16 %v935, %v934
        %v948 = vpack.c.b16 %v937, %v936
        %v949 = vpack.c.b16 %v939, %v938
        %v950 = vpack.c.b16 %v941, %v940
        %v951 = vpack.c.b16 %v943, %v942
        %960 = vmatpush.bf16.msra.mxu0 %v951
        %961 = vmatpush.bf16.msra.mxu0 %v950
        %962 = vmatpush.bf16.msra.mxu0 %v949
        %963 = vmatpush.bf16.msra.mxu0 %v948
        %964 = vmatpush.bf16.msra.mxu0 %v947
        %965 = vmatpush.bf16.msra.mxu0 %v946
        %966 = vmatpush.bf16.msra.mxu0 %v945
        %967 = vmatpush.bf16.msra.mxu0 %v944
        %968 = vmatmul.bf16.gmra.mxu0 %v910
        %v969 = vpop.f32.mrf.mxu0
        %v970 = vadd.f32 %v878, %v969
        %v971 = vpop.f32.mrf.mxu0
        %972 = vdwg.mxu0
        %973 = vst [vmem:[%s247] sm:$0xff] %v970
        %s974 = sand.u32 %s159, 1
        %s975 = scalar_lea.sflag [#allocation3], %s974
        %s976 = sand.u32 %s159, 1
        %s977 = smul.addr %s976, 8
        %s978 = scalar_lea.vmem [#allocation2], %s977
        // Predicated region
        $region45: #{tpu_custom_call.1} parent=43 // pred_check
          %p979 = pneg %p169
        $region46: #{tpu_custom_call.1} parent=43 // pred_check_branch
          %981 = sbr.rel (%p979) target = $region48
        $region47: #{tpu_custom_call.1} parent=43 // pred_region
          %983 = vsyncadd %s975, 0
          %s984 = smul.addr %s20, 8
          %s985 = scalar_lea.hbm %s6, %s984
          %s987 = sshll.u32 %s978, 4
          %s988 = int_to_ptr.vmem [resolvable:$true] %s987
          %s989 = sshll.u32 %s985, 4
          %s990 = int_to_ptr.hbm [resolvable:$true] %s989
          %992 = dma.vmem_to_hbm [thread:$0]  %s988, 128, %s990, %s975
        $region48: #{tpu_custom_call.1} parent=43 // pred_fallthru
          _
      $region44: #{tpu_custom_call.1} parent=5 // pred_fallthru
        _
      %p993 = scmp.le.s32.totalorder 2, %s15
      // Predicated region
      $region49: #{tpu_custom_call.1} parent=5 // pred_check
        %p994 = pneg %p993
      $region50: #{tpu_custom_call.1} parent=5 // pred_check_branch
        %996 = sbr.rel (%p994) target = $region52
      $region51: #{tpu_custom_call.1} parent=5 // pred_region
        %s997 = ssub.s32 %s15, 2
        // Predicated region
        $region53: #{tpu_custom_call.1} parent=51 // pred_check
          %p998 = pneg %p175
        $region54: #{tpu_custom_call.1} parent=51 // pred_check_branch
          %1000 = sbr.rel (%p998) target = $region56
        $region55: #{tpu_custom_call.1} parent=51 // pred_region
          %s1001 = sand.u32 %s160, 1
          %s1002 = scalar_lea.sflag [#allocation3], %s1001
          %s1003 = sand.u32 %s160, 1
          %s1004 = smul.addr %s1003, 8
          %s1005 = scalar_lea.vmem [#allocation2], %s1004
          %1007 = dma.done %s1002, 128
        $region56: #{tpu_custom_call.1} parent=51 // pred_fallthru
          _
      $region52: #{tpu_custom_call.1} parent=5 // pred_fallthru
        _
    $region6: #{tpu_custom_call.1} parent=1 // loop_footer
      %s19 = sadd.s32 1, %s15
    $region7: #{tpu_custom_call.1} parent=1 // loop_footer_branch
      %14 = sbr.rel target = $region3
    $region8: #{tpu_custom_call.1} parent=1 // loop_exit
      _
    %1008 = vsyncpa [#allocation3], 1
    %s1009 = scalar_lea.sflag [#allocation3], 1
    %1010 = vsyncpa %s1009, 1

</llo_original>
